<compile_context>
chip_gen: v5e
topology: v5e:2x2
jax: 0.10.0
libtpu: 0.0.40
codegen_flags: <defaults>
</compile_context>

<pallas_src>
import functools

import jax
import jax.numpy as jnp
from jax.experimental import pallas as pl
from jax.experimental.pallas import tpu as pltpu


# ----------------------------------------------------------------------------
# shared helpers
# ----------------------------------------------------------------------------

def _same_pool_params(L: int, k: int):
    """Exactly the PyTorch padding computation (self.stride = 1)."""
    stride = 1
    out_dim = (L + stride - 1) // stride
    p = max(0, (out_dim - 1) * stride + k - L)
    pad_left = p // 2
    # nn.MaxPool1d(kernel_size=k) => stride = k over the zero-padded signal.
    L_out = (L + p - k) // k + 1
    return p, pad_left, L_out


def _vmem_capacity_bytes() -> int:
    try:
        return int(pltpu.get_tpu_info().vmem_capacity_bytes)
    except Exception:  # non-TPU tracing / older jax: assume the smallest (v7x, 64 MiB)
        return 64 << 20


def _phase_max(cur, k: int, start: int, count: int):
    """Max over `count` stride-k lane phases of `cur`, beginning at offset `start`."""
    acc = cur[:, start::k]
    for i in range(1, count):
        acc = jnp.maximum(acc, cur[:, start + i::k])
    return acc


# ----------------------------------------------------------------------------
# fast path: single HBM pass, strided phase gather inside the kernel
# ----------------------------------------------------------------------------

def _pool_kernel(cur_ref, o_ref, *, k, L, W, mask_tail):
    """pad_left == 0: every window lies fully inside the current block."""
    j = pl.program_id(1)
    cur = cur_ref[...]
    if mask_tail:
        # Right SAME zero padding + zeroing the undefined tail of the partial
        # last block (garbage past column L).  Do NOT remove: partial blocks
        # hold stale VMEM beyond the valid region.
        lane = jax.lax.broadcasted_iota(jnp.int32, cur.shape, 1)
        cur = jnp.where(lane < (L - j * W), cur, jnp.zeros_like(cur))
    o_ref[...] = _phase_max(cur, k, 0, k).astype(o_ref.dtype)


def _pool_kernel_halo(cur_ref, prev_ref, o_ref, *, k, pad_left, L, W, mask_tail):
    """pad_left > 0: output t is max over padded window columns t*k + i,
    i in [0, k), i.e. local input columns t*k + (i - pad_left)."""
    j = pl.program_id(1)
    cur = cur_ref[...]
    if mask_tail:
        lane = jax.lax.broadcasted_iota(jnp.int32, cur.shape, 1)
        cur = jnp.where(lane < (L - j * W), cur, jnp.zeros_like(cur))

    # Phases i >= pad_left live entirely inside `cur`.
    hi = _phase_max(cur, k, 0, k - pad_left)
    # Phases i < pad_left of output t live at local column (t-1)*k + (k-pad_left+i),
    # i.e. one output to the "left": gather them at stride k, then shift one lane
    # right.  Lane 0 instead needs the pad_left columns just before this block:
    # the halo max for j > 0, or the SAME zero padding (F.pad constant 0) at j == 0.
    lo = _phase_max(cur, k, k - pad_left, pad_left)
    halo = prev_ref[:, 128 - pad_left:]                    # (TILE_R, pad_left)
    halo_max = jnp.max(halo, axis=1, keepdims=True)        # (TILE_R, 1)
    halo_max = jnp.where(j > 0, halo_max, jnp.zeros_like(halo_max))
    lo = jnp.concatenate([halo_max.astype(lo.dtype), lo[:, :-1]], axis=1)

    o_ref[...] = jnp.maximum(hi, lo).astype(o_ref.dtype)


def _forward_fast(x: jax.Array, k: int) -> jax.Array:
    N, C, L = x.shape
    p, pad_left, L_out = _same_pool_params(L, k)
    # The halo block is a single 128-column strip -> supports pad_left <= 128.
    assert pad_left <= 128, "kernel_size too large for the 128-wide halo block"

    R = N * C
    xr = x.reshape(R, L)                      # free reshape; rows = flattened (N, C)

    itemsize = int(jnp.dtype(x.dtype).itemsize)
    sub = {4: 8, 2: 16, 1: 32}.get(itemsize, 8)

    # Generation-aware VMEM budget for ONE `cur` buffer (Pallas double-buffers).
    vmem_cap = _vmem_capacity_bytes()
    budget = max(2 << 20, min(8 << 20, vmem_cap // 10))

    TILE_R = min(256, pl.cdiv(R, sub) * sub)
    TILE_LO = min(2048, pl.cdiv(L_out, 128) * 128)
    while TILE_LO > 128 and TILE_R * TILE_LO * k * itemsize > budget:
        TILE_LO -= 128
    while TILE_R > sub and TILE_R * TILE_LO * k * itemsize > budget:
        TILE_R = max(sub, (TILE_R // 2 // sub) * sub)

    # Give both v7x TensorCores at least one block when there is enough work.
    if pl.cdiv(R, TILE_R) * pl.cdiv(L_out, TILE_LO) < 2:
        if L_out > 128:
            TILE_LO = pl.cdiv(pl.cdiv(L_out, 2), 128) * 128
        elif R > sub:
            TILE_R = pl.cdiv(pl.cdiv(R, 2), sub) * sub

    W = TILE_LO * k                           # input columns consumed per output tile
    grid = (pl.cdiv(R, TILE_R), pl.cdiv(L_out, TILE_LO))
    # cdiv(L_out, TILE_LO) == cdiv(L, W): the cur blocks tile the input exactly.
    # The right-edge mask is only needed when the column tiles run past L.
    mask_tail = grid[1] * W > L
    use_halo = pad_left > 0

    in_bytes = R * L * itemsize
    out_bytes = R * L_out * itemsize
    halo_bytes = grid[0] * grid[1] * TILE_R * 128 * itemsize if use_halo else 0

    common = dict(
        out_shape=jax.ShapeDtypeStruct((R, L_out), x.dtype),
        grid=grid,
        out_specs=pl.BlockSpec((TILE_R, TILE_LO), lambda r, j: (r, j)),
        compiler_params=pltpu.CompilerParams(
            dimension_semantics=("parallel", "parallel"),
            vmem_limit_bytes=int(min(vmem_cap // 2, 48 << 20))),
        cost_estimate=pl.CostEstimate(
            flops=int(R) * int(L_out) * max(k - 1, 1),
            transcendentals=0,
            bytes_accessed=int(in_bytes + halo_bytes + out_bytes)),
    )

    if use_halo:
        prev_per_tile = W // 128
        kern = functools.partial(_pool_kernel_halo, k=k, pad_left=pad_left,
                                 L=L, W=W, mask_tail=mask_tail)
        out2d = pl.pallas_call(
            kern,
            in_specs=[
                # current input block: columns [j*W, (j+1)*W)
                pl.BlockSpec((TILE_R, W), lambda r, j: (r, j)),
                # the 128 columns immediately before it (clamped to block 0 at j == 0;
                # its value is zero-selected in-kernel for j == 0)
                pl.BlockSpec((TILE_R, 128),
                             lambda r, j: (r, jnp.maximum(j * prev_per_tile - 1, 0))),
            ],
            **common,
        )(xr, xr)
    else:
        kern = functools.partial(_pool_kernel, k=k, L=L, W=W, mask_tail=mask_tail)
        out2d = pl.pallas_call(
            kern,
            in_specs=[pl.BlockSpec((TILE_R, W), lambda r, j: (r, j))],
            **common,
        )(xr)

    return out2d.reshape(N, C, L_out)


# ----------------------------------------------------------------------------
# fallback path: always-lowerable Pallas kernel (phase axis pre-split by XLA)
# ----------------------------------------------------------------------------

def _fallback_kernel(xph_ref, o_ref, *, k):
    acc = xph_ref[:, 0, :]
    for i in range(1, k):
        acc = jnp.maximum(acc, xph_ref[:, i, :])
    o_ref[...] = acc.astype(o_ref.dtype)


def _forward_fallback(x: jax.Array, k: int) -> jax.Array:
    # TODO(synk): used only if Mosaic rejects lane-strided value slices
    # (v[:, s::k]); the phase de-interleave then costs one extra XLA pass.
    N, C, L = x.shape
    p, pad_left, L_out = _same_pool_params(L, k)
    R = N * C
    need = L_out * k                              # padded columns actually pooled
    right = max(0, need - pad_left - L)
    xp = jnp.pad(x.reshape(R, L), ((0, 0), (pad_left, right)),
                 constant_values=0)[:, :need]
    xph = xp.reshape(R, L_out, k).transpose(0, 2, 1)   # (R, k, L_out), phase-major

    itemsize = int(jnp.dtype(x.dtype).itemsize)
    sub = {4: 8, 2: 16, 1: 32}.get(itemsize, 8)
    TILE_R = min(256, pl.cdiv(R, sub) * sub)
    TILE_LO = min(1024, pl.cdiv(L_out, 128) * 128)
    while TILE_LO > 128 and TILE_R * max(8, k) * TILE_LO * itemsize > (6 << 20):
        TILE_LO -= 128

    grid = (pl.cdiv(R, TILE_R), pl.cdiv(L_out, TILE_LO))
    out2d = pl.pallas_call(
        functools.partial(_fallback_kernel, k=k),
        out_shape=jax.ShapeDtypeStruct((R, L_out), x.dtype),
        grid=grid,
        in_specs=[pl.BlockSpec((TILE_R, k, TILE_LO), lambda r, j: (r, 0, j))],
        out_specs=pl.BlockSpec((TILE_R, TILE_LO), lambda r, j: (r, j)),
        compiler_params=pltpu.CompilerParams(
            dimension_semantics=("parallel", "parallel")),
    )(xph)
    return out2d.reshape(N, C, L_out)


# ----------------------------------------------------------------------------
# dispatch + reference
# ----------------------------------------------------------------------------

def _reference(x: jax.Array, k: int) -> jax.Array:
    """Pure-JAX reference with identical PyTorch semantics (zero SAME pad)."""
    N, C, L = x.shape
    p, pad_left, L_out = _same_pool_params(L, k)
    need = L_out * k
    right = max(0, need - pad_left - L)
    xp = jnp.pad(x, ((0, 0), (0, 0), (pad_left, right)),
                 constant_values=0)[:, :, :need]
    return jnp.max(xp.reshape(N, C, L_out, k), axis=-1)


_FAST_PATH_OK = None


def _fast_path_available() -> bool:
    """Probe once whether the single-pass kernel lowers AND matches the reference."""
    global _FAST_PATH_OK
    if _FAST_PATH_OK is None:
        ok = True
        try:
            for i, (c, l, k) in enumerate(((6, 1000, 3), (4, 37, 2))):
                xc = jax.random.normal(jax.random.PRNGKey(100 + i), (1, c, l),
                                       dtype=jnp.float32)
                got = jax.block_until_ready(_forward_fast(xc, k))
                ok = ok and bool(jnp.allclose(got, _reference(xc, k)))
        except Exception:
            ok = False
        _FAST_PATH_OK = ok
    return _FAST_PATH_OK


def my_max_pool1d_pad_same(x: jax.Array, kernel_size: int) -> jax.Array:
    """JAX/Pallas equivalent of MyMaxPool1dPadSame.forward.  x: (N, C, L).

    Note: like the PyTorch module, SAME padding uses constant ZERO (not -inf),
    so edge windows whose real samples are all negative return 0.
    """
    k = int(kernel_size)
    N, C, L = x.shape
    assert k >= 1 and L >= 1
    if k <= 257 and _fast_path_available():  # pad_left <= 128 fits the halo strip
        return _forward_fast(x, k)
    return _forward_fallback(x, k)


# ----------------------------------------------------------------------------
# self-test
# ----------------------------------------------------------------------------

if __name__ == "__main__":
    key = jax.random.PRNGKey(0)

    configs = [
        (2, 4, 16, 3),      # small shape implied by the module
        (2, 4, 2000, 3),    # multi column tile: halo + one-lane shift + edge mask
        (2, 4, 37, 2),      # even kernel: pad_left == 0, single-input path
        (1, 3, 5, 4),       # kernel wider than half the signal, heavy masking
        (2, 160, 200, 3),   # multiple row tiles (partial last row block)
    ]
    for (n, c, l, k) in configs:
        key, skey = jax.random.split(key)
        x = jax.random.normal(skey, (n, c, l), dtype=jnp.float32)
        out = jax.block_until_ready(my_max_pool1d_pad_same(x, k))
        ref = _reference(x, k)
        assert out.shape == ref.shape, (out.shape, ref.shape)
        assert jnp.allclose(out, ref), f"mismatch vs reference for {(n, c, l, k)}"

    print("KERNEL_OK")
</pallas_src>

<mosaic_0001>
module attributes {stable_mosaic.version = 11 : i64} {
  func.func @_fallback_kernel(%arg0: i32, %arg1: i32, %arg2: memref<8x3x128xf32, #tpu.memory_space<vmem>>, %arg3: memref<8x128xf32, #tpu.memory_space<vmem>>) attributes {dimension_semantics = [#tpu.dimension_semantics<parallel>, #tpu.dimension_semantics<parallel>], iteration_bounds = array<i64: 1, 1>, scalar_prefetch = 0 : i64, scratch_operands = 0 : i64, tpu.core_type = #tpu.core_type<tc>, window_params = [{transform_indices = @transform_0, window_bounds = array<i64: 8, 3, 128>}, {transform_indices = @transform_1, window_bounds = array<i64: 8, 128>}]} {
    %c0 = arith.constant 0 : index
    %c0_0 = arith.constant 0 : index
    %c0_1 = arith.constant 0 : index
    %0 = vector.load %arg2[%c0, %c0_0, %c0_1] : memref<8x3x128xf32, #tpu.memory_space<vmem>>, vector<8x1x128xf32>
    %1 = vector.shape_cast %0 : vector<8x1x128xf32> to vector<8x128xf32>
    %c0_2 = arith.constant 0 : index
    %c1 = arith.constant 1 : index
    %c0_3 = arith.constant 0 : index
    %2 = vector.load %arg2[%c0_2, %c1, %c0_3] : memref<8x3x128xf32, #tpu.memory_space<vmem>>, vector<8x1x128xf32>
    %3 = vector.shape_cast %2 : vector<8x1x128xf32> to vector<8x128xf32>
    %4 = arith.maximumf %1, %3 : vector<8x128xf32>
    %c0_4 = arith.constant 0 : index
    %c2 = arith.constant 2 : index
    %c0_5 = arith.constant 0 : index
    %5 = vector.load %arg2[%c0_4, %c2, %c0_5] : memref<8x3x128xf32, #tpu.memory_space<vmem>>, vector<8x1x128xf32>
    %6 = vector.shape_cast %5 : vector<8x1x128xf32> to vector<8x128xf32>
    %7 = arith.maximumf %4, %6 : vector<8x128xf32>
    %c0_6 = arith.constant 0 : index
    %c0_7 = arith.constant 0 : index
    %8 = vector.load %arg3[%c0_6, %c0_7] : memref<8x128xf32, #tpu.memory_space<vmem>>, vector<8x128xf32>
    tpu.vector_store %arg3[%c0_6, %c0_7], %7 {strides = array<i32>} : memref<8x128xf32, #tpu.memory_space<vmem>>, vector<8x128xf32>,
    return
  }
  func.func @transform_0(%arg0: i32, %arg1: i32) -> (i32, i32, i32) {
    %c0_i32 = arith.constant 0 : i32
    %c0_i32_0 = arith.constant 0 : i32
    return %arg0, %c0_i32, %arg1 : i32, i32, i32
  }
  func.func @transform_1(%arg0: i32, %arg1: i32) -> (i32, i32) {
    %c0_i32 = arith.constant 0 : i32
    return %arg0, %arg1 : i32, i32
  }
}

</mosaic_0001>

<llo_original>
// kernel: tpu_custom_call.1
$region0: #{tpu_custom_call.1}
  #allocation0 [shape = 'u32[]', space=smem, size = 0x4, offset = 0x4, fixed_abs, tag = 'smem constant byte address 0x4 - core index']
  #allocation1 [shape = 'u32[72,128]{1,0:T(1,128)}', space=vmem, size = 0x9000, scoped, tag = 'internal scratch']
  %s0 = inlined_call_operand.vmem [shape: f32[8,3,6], index: 0, kind: input, shape index: {}]
  %s1 = inlined_call_operand.hbm [shape: f32[8,6], index: 1, kind: output, shape index: {}]
  %s2 = sld [smem:[#allocation0]]
  $region14: #{tpu_custom_call.1} parent=0
    _
  %s4 = ssub.s32 1, %s2
  %s5 = scalar_select 0, %s4, %s2
  $region1: #{tpu_custom_call.1} parent=0
    #allocation2 [shape = 'u8[4096]{0}', space=vmem, size = 0x1000, scoped, tag = 'output window, operand 0, single buffered']
    #allocation3 [shape = 's32[1]{0}', space=sflag, size = 0x4, scoped, tag = 'scoped memory for tpu_custom_call.1']
    %6 = vsyncpa [#allocation3], 0
    // Predicated region
    $region2: #{tpu_custom_call.1} parent=1 // pred_check
      _
    $region3: #{tpu_custom_call.1} parent=1 // pred_check_branch
      %8 = sbr.rel (0) target = $region5
    $region4: #{tpu_custom_call.1} parent=1 // pred_region
      _
    $region5: #{tpu_custom_call.1} parent=1 // pred_fallthru
      _
    %v9 = vld [vmem:[%s0] sm:$0x1]
    %v10 = vld [vmem:[%s0 + $0x4] sm:$0x1]
    %v11 = vld [vmem:[%s0 + $0x8] sm:$0x1]
    %v12 = vld [vmem:[%s0 + $0xc] sm:$0x1]
    %v13 = vld [vmem:[%s0 + $0x10] sm:$0x1]
    %v14 = vld [vmem:[%s0 + $0x14] sm:$0x1]
    %v15 = vld [vmem:[%s0 + $0x18] sm:$0x1]
    %v16 = vld [vmem:[%s0 + $0x1c] sm:$0x1]
    %v17 = vld [vmem:[%s0 + $0x1] sm:$0x1]
    %v18 = vld [vmem:[%s0 + $0x5] sm:$0x1]
    %v19 = vld [vmem:[%s0 + $0x9] sm:$0x1]
    %v20 = vld [vmem:[%s0 + $0xd] sm:$0x1]
    %v21 = vld [vmem:[%s0 + $0x11] sm:$0x1]
    %v22 = vld [vmem:[%s0 + $0x15] sm:$0x1]
    %v23 = vld [vmem:[%s0 + $0x19] sm:$0x1]
    %v24 = vld [vmem:[%s0 + $0x1d] sm:$0x1]
    %v25 = vmax.f32 %v9, %v17
    %v26 = vmax.f32 %v10, %v18
    %v27 = vmax.f32 %v11, %v19
    %v28 = vmax.f32 %v12, %v20
    %v29 = vmax.f32 %v13, %v21
    %v30 = vmax.f32 %v14, %v22
    %v31 = vmax.f32 %v15, %v23
    %v32 = vmax.f32 %v16, %v24
    %v33 = vld [vmem:[%s0 + $0x2] sm:$0x1]
    %v34 = vld [vmem:[%s0 + $0x6] sm:$0x1]
    %v35 = vld [vmem:[%s0 + $0xa] sm:$0x1]
    %v36 = vld [vmem:[%s0 + $0xe] sm:$0x1]
    %v37 = vld [vmem:[%s0 + $0x12] sm:$0x1]
    %v38 = vld [vmem:[%s0 + $0x16] sm:$0x1]
    %v39 = vld [vmem:[%s0 + $0x1a] sm:$0x1]
    %v40 = vld [vmem:[%s0 + $0x1e] sm:$0x1]
    %v41 = vmax.f32 %v25, %v33
    %v42 = vmax.f32 %v26, %v34
    %v43 = vmax.f32 %v27, %v35
    %v44 = vmax.f32 %v28, %v36
    %v45 = vmax.f32 %v29, %v37
    %v46 = vmax.f32 %v30, %v38
    %v47 = vmax.f32 %v31, %v39
    %v48 = vmax.f32 %v32, %v40
    %v57 = vrot.slane %v42, 7
    %vm58 = vcmask 1041409
    %v59 = vsel %vm58, %v57, %v41
    %v60 = vrot.slane %v43, 6
    %vm61 = vcmask 1042434
    %v62 = vsel %vm61, %v60, %v59
    %v63 = vrot.slane %v44, 5
    %vm64 = vcmask 1043459
    %v65 = vsel %vm64, %v63, %v62
    %v66 = vrot.slane %v45, 4
    %vm67 = vcmask 1044484
    %v68 = vsel %vm67, %v66, %v65
    %v69 = vrot.slane %v46, 3
    %vm70 = vcmask 1045509
    %v71 = vsel %vm70, %v69, %v68
    %v72 = vrot.slane %v47, 2
    %vm73 = vcmask 1046534
    %v74 = vsel %vm73, %v72, %v71
    %v75 = vrot.slane %v48, 1
    %vm76 = vcmask 1047559
    %v77 = vsel %vm76, %v75, %v74
    %79 = vst [vmem:[#allocation2] sm:$0xff] %v77
    // Predicated region
    $region6: #{tpu_custom_call.1} parent=1 // pred_check
      _
    $region7: #{tpu_custom_call.1} parent=1 // pred_check_branch
      %81 = sbr.rel (0) target = $region9
    $region8: #{tpu_custom_call.1} parent=1 // pred_region
      %83 = vsyncadd [#allocation3], 0
      %s85 = sshll.u32 [#allocation2], 4
      %s86 = int_to_ptr.vmem [resolvable:$true] %s85
      %s87 = sshll.u32 %s1, 4
      %s88 = int_to_ptr.hbm [resolvable:$true] %s87
      %90 = dma.vmem_to_hbm [thread:$0]  %s86, 128, %s88, [#allocation3]
    $region9: #{tpu_custom_call.1} parent=1 // pred_fallthru
      _
    // Predicated region
    $region10: #{tpu_custom_call.1} parent=1 // pred_check
      _
    $region11: #{tpu_custom_call.1} parent=1 // pred_check_branch
      %92 = sbr.rel (0) target = $region13
    $region12: #{tpu_custom_call.1} parent=1 // pred_region
      %94 = dma.done [#allocation3], 128
    $region13: #{tpu_custom_call.1} parent=1 // pred_fallthru
      _
    %95 = vsyncpa [#allocation3], 1

</llo_original>
